<compile_context>
chip_gen: v5e
topology: v5e:2x2
jax: 0.10.0
libtpu: 0.0.40
codegen_flags: <defaults>
</compile_context>

<pallas_src>
import functools

import jax
import jax.numpy as jnp
from jax import lax
from jax.experimental import pallas as pl
from jax.experimental.pallas import tpu as pltpu

NEG_SLOPE = 0.2  # nn.LeakyReLU(negative_slope=0.2)
LANES = 128
SUBLANES = 8


def _round_up(x, m):
    return ((x + m - 1) // m) * m


def planar_flow_kernel(params_ref, z_ref, sld_ref, x_ref, sld_out_ref):
    """Fused K-layer planar flow on one (block_rows, 128) tile.

    params_ref: (K, 6) f32 in SMEM -- per layer
                [w, b, uhat, 0.2*uhat, log_det_neg, log_det_pos].
    z_ref / sld_ref / x_ref / sld_out_ref: (block_rows, 128) f32 in VMEM.
    """
    block_rows = z_ref.shape[0]
    num_layers = params_ref.shape[0]
    # Chunk height: <= 64 rows (8 vregs/operand) so z & sld stay vreg-resident
    # across all K layers of a chunk.  block_rows is always a multiple of 8.
    chunk = next(c for c in (64, 32, 16, 8) if block_rows % c == 0)
    num_chunks = block_rows // chunk

    def chunk_body(i, carry):
        r = pl.multiple_of(i * chunk, chunk)
        z = z_ref[pl.ds(r, chunk), :]
        sld = sld_ref[pl.ds(r, chunk), :]
        for k in range(num_layers):               # K is small & static -> unrolled
            w = params_ref[k, 0]
            b = params_ref[k, 1]
            uhat = params_ref[k, 2]
            uhat_neg = params_ref[k, 3]
            ld_neg = params_ref[k, 4]
            ld_pos = params_ref[k, 5]

            lin = w * z + b                       # dot(w, z) + b   (D == 1)
            neg = lin < 0.0
            # z + uhat * LeakyReLU(lin)  ==  z + where(neg, 0.2*uhat, uhat) * lin
            z = z + jnp.where(neg, uhat_neg, uhat) * lin
            # log|1 + dh(lin) * w*uhat| takes only two values -> 2-way select.
            sld = sld + jnp.where(neg, ld_neg, ld_pos)
        x_ref[pl.ds(r, chunk), :] = z
        sld_out_ref[pl.ds(r, chunk), :] = sld
        return carry

    lax.fori_loop(0, num_chunks, chunk_body, 0, unroll=True)


def fold_params(raw_params):
    """(K, 3) [w, u, b] -> (K, 6) [w, b, uhat, 0.2*uhat, ld_neg, ld_pos].

    All parameter-only math runs here once, outside the kernel.
    """
    raw = raw_params.astype(jnp.float32)
    w, u, b = raw[:, 0], raw[:, 1], raw[:, 2]
    wtu = w * u
    # torch: -1 + log(1 + exp(wtu)); softplus is the numerically stable form.
    m_wtu = -1.0 + jax.nn.softplus(wtu)
    # torch: (m_wtu - wtu) * w / dot(w, w); for D == 1 this is (m_wtu - wtu)/w,
    # which is algebraically identical and better conditioned.
    # NOTE: like the torch module, undefined (inf/nan) at w == 0.
    uhat = u + (m_wtu - wtu) / w
    w_uhat = w * uhat
    ld_neg = jnp.log(jnp.abs(1.0 + NEG_SLOPE * w_uhat))   # lin <  0 branch
    ld_pos = jnp.log(jnp.abs(1.0 + w_uhat))               # lin >= 0 branch
    return jnp.stack([w, b, uhat, NEG_SLOPE * uhat, ld_neg, ld_pos], axis=1)


@functools.partial(jax.jit, static_argnames=("block_rows",))
def planar_flow(raw_params, z, sum_log_det, *, block_rows=1024):
    """Fused composite planar flow over a batch of independent 1-D samples.

    raw_params: (K, 3) f32 rows [w, u, b];  z, sum_log_det: (B,) f32.
    Returns (x, sum_log_det_out), each (B,) f32.
    """
    B = z.shape[0]
    params = fold_params(raw_params)
    z = z.astype(jnp.float32)
    sum_log_det = sum_log_det.astype(jnp.float32)

    rows = _round_up(pl.cdiv(B, LANES), SUBLANES)   # lane+sublane dense slab
    total = rows * LANES
    pad = total - B

    if pad == 0:
        # Zero-copy path: (B,) -> (rows, 128) reshape is a layout bitcast.
        z_p = z.reshape(rows, LANES)
        sld_p = sum_log_det.reshape(rows, LANES)
    else:
        # Ragged tail: pad only to the next (8,128) slab (< 1024 extra elems).
        z_p = jnp.pad(z, (0, pad)).reshape(rows, LANES)
        sld_p = jnp.pad(sum_log_det, (0, pad)).reshape(rows, LANES)

    # Block rows: >= 2 grid steps whenever possible so the "parallel" axis can
    # shard across v7x's two TensorCores; no rounding of `rows` up to br.
    if rows > 2 * block_rows:
        br = block_rows
    else:
        br = max(SUBLANES, _round_up(pl.cdiv(rows, 2), SUBLANES))
    br = min(br, rows)
    grid = (pl.cdiv(rows, br),)   # Pallas masks a ragged last block

    tile = pl.BlockSpec((br, LANES), lambda i: (i, 0))

    x_p, sld_out_p = pl.pallas_call(
        planar_flow_kernel,
        out_shape=(
            jax.ShapeDtypeStruct((rows, LANES), jnp.float32),
            jax.ShapeDtypeStruct((rows, LANES), jnp.float32),
        ),
        grid=grid,
        in_specs=[
            pl.BlockSpec(memory_space=pltpu.MemorySpace.SMEM),  # (K, 6) param table
            tile,                                               # z
            tile,                                               # sum_log_det
        ],
        out_specs=(tile, tile),
        compiler_params=pltpu.CompilerParams(
            dimension_semantics=("parallel",),
        ),
    )(params, z_p, sld_p)

    if pad == 0:
        return x_p.reshape(B), sld_out_p.reshape(B)
    return x_p.reshape(total)[:B], sld_out_p.reshape(total)[:B]


def planar_flow_ref(raw_params, z, sum_log_det):
    """Pure-JAX reference mirroring the torch forward, layer by layer."""
    z = z.astype(jnp.float32)
    sld = sum_log_det.astype(jnp.float32)
    for k in range(raw_params.shape[0]):
        w, u, b = raw_params[k, 0], raw_params[k, 1], raw_params[k, 2]
        lin = w * z + b
        wtu = w * u
        m_wtu = -1.0 + jnp.log(1.0 + jnp.exp(wtu))
        uhat = u + (m_wtu - wtu) * w / (w * w)
        h = jnp.where(lin < 0.0, NEG_SLOPE * lin, lin)
        z = z + uhat * h
        dh = jnp.where(lin < 0.0, NEG_SLOPE, 1.0)
        sld = sld + jnp.log(jnp.abs(1.0 + dh * (w * uhat)))
    return z, sld


if __name__ == "__main__":
    key = jax.random.PRNGKey(0)
    k_p, k_z1, k_z2 = jax.random.split(key, 3)

    K = 4            # number of composite planar-flow layers
    init_sigma = 0.01

    # Per-layer init matching the torch module: w, u ~ N(0, 0.01), b = 0
    wu = jax.random.normal(k_p, (K, 2), jnp.float32) * init_sigma
    raw_params = jnp.concatenate([wu, jnp.zeros((K, 1), jnp.float32)], axis=1)  # (K, 3)

    cases = (
        ("aligned", k_z1, 2048),   # B % 1024 == 0 -> zero-copy path, 2 grid steps
        ("ragged", k_z2, 1000),    # exercises the minimal-pad tail path
    )
    for name, kz, B in cases:
        # z ~ Normal(3.0, 0.5), like px in the original script
        z = 3.0 + 0.5 * jax.random.normal(kz, (B,), jnp.float32)
        sum_log_det = jnp.zeros((B,), jnp.float32)

        x_out, sld_out = planar_flow(raw_params, z, sum_log_det)
        jax.block_until_ready((x_out, sld_out))

        x_ref, sld_ref = planar_flow_ref(raw_params, z, sum_log_det)
        assert jnp.allclose(x_out, x_ref, atol=1e-5, rtol=1e-5), name
        assert jnp.allclose(sld_out, sld_ref, atol=1e-5, rtol=1e-5), name

    print("KERNEL_OK")
</pallas_src>

<mosaic_0001>
module attributes {stable_mosaic.version = 11 : i64} {
  func.func @planar_flow_kernel(%arg0: i32, %arg1: memref<4x6xf32, #tpu.memory_space<smem>>, %arg2: memref<8x128xf32, #tpu.memory_space<vmem>>, %arg3: memref<8x128xf32, #tpu.memory_space<vmem>>, %arg4: memref<8x128xf32, #tpu.memory_space<vmem>>, %arg5: memref<8x128xf32, #tpu.memory_space<vmem>>) attributes {dimension_semantics = [#tpu.dimension_semantics<parallel>], iteration_bounds = array<i64: 2>, scalar_prefetch = 0 : i64, scratch_operands = 0 : i64, tpu.core_type = #tpu.core_type<tc>, window_params = [{transform_indices = @transform_0, window_bounds = array<i64: 4, 6>}, {transform_indices = @transform_1, window_bounds = array<i64: 8, 128>}, {transform_indices = @transform_2, window_bounds = array<i64: 8, 128>}, {transform_indices = @transform_3, window_bounds = array<i64: 8, 128>}, {transform_indices = @transform_4, window_bounds = array<i64: 8, 128>}]} {
    %c0_i32 = arith.constant 0 : i32
    %c8_i32 = arith.constant 8 : i32
    %0 = arith.muli %c0_i32, %c8_i32 : i32
    %1 = tpu.assume_multiple %0, 8 : i32
    %2 = arith.index_cast %1 : i32 to index
    %c0 = arith.constant 0 : index
    %3 = vector.load %arg2[%2, %c0] : memref<8x128xf32, #tpu.memory_space<vmem>>, vector<8x128xf32>
    %4 = arith.index_cast %1 : i32 to index
    %c0_0 = arith.constant 0 : index
    %5 = vector.load %arg3[%4, %c0_0] : memref<8x128xf32, #tpu.memory_space<vmem>>, vector<8x128xf32>
    %c0_1 = arith.constant 0 : index
    %c0_2 = arith.constant 0 : index
    %6 = memref.load %arg1[%c0_1, %c0_2] : memref<4x6xf32, #tpu.memory_space<smem>>
    %c0_3 = arith.constant 0 : index
    %c1 = arith.constant 1 : index
    %7 = memref.load %arg1[%c0_3, %c1] : memref<4x6xf32, #tpu.memory_space<smem>>
    %c0_4 = arith.constant 0 : index
    %c2 = arith.constant 2 : index
    %8 = memref.load %arg1[%c0_4, %c2] : memref<4x6xf32, #tpu.memory_space<smem>>
    %c0_5 = arith.constant 0 : index
    %c3 = arith.constant 3 : index
    %9 = memref.load %arg1[%c0_5, %c3] : memref<4x6xf32, #tpu.memory_space<smem>>
    %c0_6 = arith.constant 0 : index
    %c4 = arith.constant 4 : index
    %10 = memref.load %arg1[%c0_6, %c4] : memref<4x6xf32, #tpu.memory_space<smem>>
    %c0_7 = arith.constant 0 : index
    %c5 = arith.constant 5 : index
    %11 = memref.load %arg1[%c0_7, %c5] : memref<4x6xf32, #tpu.memory_space<smem>>
    %12 = vector.broadcast %6 : f32 to vector<8x128xf32>
    %13 = arith.mulf %12, %3 : vector<8x128xf32>
    %14 = vector.broadcast %7 : f32 to vector<8x128xf32>
    %15 = arith.addf %13, %14 : vector<8x128xf32>
    %cst = arith.constant 0.000000e+00 : f32
    %16 = vector.broadcast %cst : f32 to vector<8x128xf32>
    %17 = arith.cmpf olt, %15, %16 : vector<8x128xf32>
    %18 = vector.broadcast %9 : f32 to vector<8x128xf32>
    %19 = vector.broadcast %8 : f32 to vector<8x128xf32>
    %20 = arith.select %17, %18, %19 : vector<8x128xi1>, vector<8x128xf32>
    %21 = arith.mulf %20, %15 : vector<8x128xf32>
    %22 = arith.addf %3, %21 : vector<8x128xf32>
    %23 = vector.broadcast %10 : f32 to vector<8x128xf32>
    %24 = vector.broadcast %11 : f32 to vector<8x128xf32>
    %25 = arith.select %17, %23, %24 : vector<8x128xi1>, vector<8x128xf32>
    %26 = arith.addf %5, %25 : vector<8x128xf32>
    %c1_8 = arith.constant 1 : index
    %c0_9 = arith.constant 0 : index
    %27 = memref.load %arg1[%c1_8, %c0_9] : memref<4x6xf32, #tpu.memory_space<smem>>
    %c1_10 = arith.constant 1 : index
    %c1_11 = arith.constant 1 : index
    %28 = memref.load %arg1[%c1_10, %c1_11] : memref<4x6xf32, #tpu.memory_space<smem>>
    %c1_12 = arith.constant 1 : index
    %c2_13 = arith.constant 2 : index
    %29 = memref.load %arg1[%c1_12, %c2_13] : memref<4x6xf32, #tpu.memory_space<smem>>
    %c1_14 = arith.constant 1 : index
    %c3_15 = arith.constant 3 : index
    %30 = memref.load %arg1[%c1_14, %c3_15] : memref<4x6xf32, #tpu.memory_space<smem>>
    %c1_16 = arith.constant 1 : index
    %c4_17 = arith.constant 4 : index
    %31 = memref.load %arg1[%c1_16, %c4_17] : memref<4x6xf32, #tpu.memory_space<smem>>
    %c1_18 = arith.constant 1 : index
    %c5_19 = arith.constant 5 : index
    %32 = memref.load %arg1[%c1_18, %c5_19] : memref<4x6xf32, #tpu.memory_space<smem>>
    %33 = vector.broadcast %27 : f32 to vector<8x128xf32>
    %34 = arith.mulf %33, %22 : vector<8x128xf32>
    %35 = vector.broadcast %28 : f32 to vector<8x128xf32>
    %36 = arith.addf %34, %35 : vector<8x128xf32>
    %cst_20 = arith.constant 0.000000e+00 : f32
    %37 = vector.broadcast %cst_20 : f32 to vector<8x128xf32>
    %38 = arith.cmpf olt, %36, %37 : vector<8x128xf32>
    %39 = vector.broadcast %30 : f32 to vector<8x128xf32>
    %40 = vector.broadcast %29 : f32 to vector<8x128xf32>
    %41 = arith.select %38, %39, %40 : vector<8x128xi1>, vector<8x128xf32>
    %42 = arith.mulf %41, %36 : vector<8x128xf32>
    %43 = arith.addf %22, %42 : vector<8x128xf32>
    %44 = vector.broadcast %31 : f32 to vector<8x128xf32>
    %45 = vector.broadcast %32 : f32 to vector<8x128xf32>
    %46 = arith.select %38, %44, %45 : vector<8x128xi1>, vector<8x128xf32>
    %47 = arith.addf %26, %46 : vector<8x128xf32>
    %c2_21 = arith.constant 2 : index
    %c0_22 = arith.constant 0 : index
    %48 = memref.load %arg1[%c2_21, %c0_22] : memref<4x6xf32, #tpu.memory_space<smem>>
    %c2_23 = arith.constant 2 : index
    %c1_24 = arith.constant 1 : index
    %49 = memref.load %arg1[%c2_23, %c1_24] : memref<4x6xf32, #tpu.memory_space<smem>>
    %c2_25 = arith.constant 2 : index
    %c2_26 = arith.constant 2 : index
    %50 = memref.load %arg1[%c2_25, %c2_26] : memref<4x6xf32, #tpu.memory_space<smem>>
    %c2_27 = arith.constant 2 : index
    %c3_28 = arith.constant 3 : index
    %51 = memref.load %arg1[%c2_27, %c3_28] : memref<4x6xf32, #tpu.memory_space<smem>>
    %c2_29 = arith.constant 2 : index
    %c4_30 = arith.constant 4 : index
    %52 = memref.load %arg1[%c2_29, %c4_30] : memref<4x6xf32, #tpu.memory_space<smem>>
    %c2_31 = arith.constant 2 : index
    %c5_32 = arith.constant 5 : index
    %53 = memref.load %arg1[%c2_31, %c5_32] : memref<4x6xf32, #tpu.memory_space<smem>>
    %54 = vector.broadcast %48 : f32 to vector<8x128xf32>
    %55 = arith.mulf %54, %43 : vector<8x128xf32>
    %56 = vector.broadcast %49 : f32 to vector<8x128xf32>
    %57 = arith.addf %55, %56 : vector<8x128xf32>
    %cst_33 = arith.constant 0.000000e+00 : f32
    %58 = vector.broadcast %cst_33 : f32 to vector<8x128xf32>
    %59 = arith.cmpf olt, %57, %58 : vector<8x128xf32>
    %60 = vector.broadcast %51 : f32 to vector<8x128xf32>
    %61 = vector.broadcast %50 : f32 to vector<8x128xf32>
    %62 = arith.select %59, %60, %61 : vector<8x128xi1>, vector<8x128xf32>
    %63 = arith.mulf %62, %57 : vector<8x128xf32>
    %64 = arith.addf %43, %63 : vector<8x128xf32>
    %65 = vector.broadcast %52 : f32 to vector<8x128xf32>
    %66 = vector.broadcast %53 : f32 to vector<8x128xf32>
    %67 = arith.select %59, %65, %66 : vector<8x128xi1>, vector<8x128xf32>
    %68 = arith.addf %47, %67 : vector<8x128xf32>
    %c3_34 = arith.constant 3 : index
    %c0_35 = arith.constant 0 : index
    %69 = memref.load %arg1[%c3_34, %c0_35] : memref<4x6xf32, #tpu.memory_space<smem>>
    %c3_36 = arith.constant 3 : index
    %c1_37 = arith.constant 1 : index
    %70 = memref.load %arg1[%c3_36, %c1_37] : memref<4x6xf32, #tpu.memory_space<smem>>
    %c3_38 = arith.constant 3 : index
    %c2_39 = arith.constant 2 : index
    %71 = memref.load %arg1[%c3_38, %c2_39] : memref<4x6xf32, #tpu.memory_space<smem>>
    %c3_40 = arith.constant 3 : index
    %c3_41 = arith.constant 3 : index
    %72 = memref.load %arg1[%c3_40, %c3_41] : memref<4x6xf32, #tpu.memory_space<smem>>
    %c3_42 = arith.constant 3 : index
    %c4_43 = arith.constant 4 : index
    %73 = memref.load %arg1[%c3_42, %c4_43] : memref<4x6xf32, #tpu.memory_space<smem>>
    %c3_44 = arith.constant 3 : index
    %c5_45 = arith.constant 5 : index
    %74 = memref.load %arg1[%c3_44, %c5_45] : memref<4x6xf32, #tpu.memory_space<smem>>
    %75 = vector.broadcast %69 : f32 to vector<8x128xf32>
    %76 = arith.mulf %75, %64 : vector<8x128xf32>
    %77 = vector.broadcast %70 : f32 to vector<8x128xf32>
    %78 = arith.addf %76, %77 : vector<8x128xf32>
    %cst_46 = arith.constant 0.000000e+00 : f32
    %79 = vector.broadcast %cst_46 : f32 to vector<8x128xf32>
    %80 = arith.cmpf olt, %78, %79 : vector<8x128xf32>
    %81 = vector.broadcast %72 : f32 to vector<8x128xf32>
    %82 = vector.broadcast %71 : f32 to vector<8x128xf32>
    %83 = arith.select %80, %81, %82 : vector<8x128xi1>, vector<8x128xf32>
    %84 = arith.mulf %83, %78 : vector<8x128xf32>
    %85 = arith.addf %64, %84 : vector<8x128xf32>
    %86 = vector.broadcast %73 : f32 to vector<8x128xf32>
    %87 = vector.broadcast %74 : f32 to vector<8x128xf32>
    %88 = arith.select %80, %86, %87 : vector<8x128xi1>, vector<8x128xf32>
    %89 = arith.addf %68, %88 : vector<8x128xf32>
    %90 = arith.index_cast %1 : i32 to index
    %c0_47 = arith.constant 0 : index
    %91 = vector.load %arg4[%90, %c0_47] : memref<8x128xf32, #tpu.memory_space<vmem>>, vector<8x128xf32>
    tpu.vector_store %arg4[%90, %c0_47], %85 {strides = array<i32>} : memref<8x128xf32, #tpu.memory_space<vmem>>, vector<8x128xf32>,
    %92 = arith.index_cast %1 : i32 to index
    %c0_48 = arith.constant 0 : index
    %93 = vector.load %arg5[%92, %c0_48] : memref<8x128xf32, #tpu.memory_space<vmem>>, vector<8x128xf32>
    tpu.vector_store %arg5[%92, %c0_48], %89 {strides = array<i32>} : memref<8x128xf32, #tpu.memory_space<vmem>>, vector<8x128xf32>,
    %c1_i32 = arith.constant 1 : i32
    return
  }
  func.func @transform_0(%arg0: i32) -> (i32, i32) {
    %c0_i32 = arith.constant 0 : i32
    %c0_i32_0 = arith.constant 0 : i32
    %c0_i32_1 = arith.constant 0 : i32
    return %c0_i32, %c0_i32_0 : i32, i32
  }
  func.func @transform_1(%arg0: i32) -> (i32, i32) {
    %c0_i32 = arith.constant 0 : i32
    %c0_i32_0 = arith.constant 0 : i32
    return %arg0, %c0_i32 : i32, i32
  }
  func.func @transform_2(%arg0: i32) -> (i32, i32) {
    %c0_i32 = arith.constant 0 : i32
    %c0_i32_0 = arith.constant 0 : i32
    return %arg0, %c0_i32 : i32, i32
  }
  func.func @transform_3(%arg0: i32) -> (i32, i32) {
    %c0_i32 = arith.constant 0 : i32
    %c0_i32_0 = arith.constant 0 : i32
    return %arg0, %c0_i32 : i32, i32
  }
  func.func @transform_4(%arg0: i32) -> (i32, i32) {
    %c0_i32 = arith.constant 0 : i32
    %c0_i32_0 = arith.constant 0 : i32
    return %arg0, %c0_i32 : i32, i32
  }
}

</mosaic_0001>

<llo_original>
// kernel: planar_flow.1
$region0: #{planar_flow.1}
  #allocation0 [shape = 'u32[]', space=smem, size = 0x4, offset = 0x4, fixed_abs, tag = 'smem constant byte address 0x4 - core index']
  #allocation1 [shape = 'u32[72,128]{1,0:T(1,128)}', space=vmem, size = 0x9000, scoped, tag = 'internal scratch']
  %s0 = inlined_call_operand.vmem [shape: f32[4,6], index: 0, kind: input, shape index: {}]
  %s1 = inlined_call_operand.vmem [shape: f32[16,128], index: 1, kind: input, shape index: {}]
  %s2 = inlined_call_operand.vmem [shape: f32[16,128], index: 2, kind: input, shape index: {}]
  %s3 = inlined_call_operand.hbm [shape: f32[16,128], index: 3, kind: output, shape index: {0}]
  %s4 = inlined_call_operand.hbm [shape: f32[16,128], index: 4, kind: output, shape index: {1}]
  %5 = xla_tuple %s3, %s4
  %s6 = sld [smem:[#allocation0]]
  $region57: #{planar_flow.1} parent=0
    _
  %s8 = ssub.s32 1, %s6
  %s9 = scalar_select 0, %s8, %s6
  $region1: #{planar_flow.1} parent=0
    #allocation2 [shape = 'u8[2048]{0}', space=smem, size = 0x800, scoped, tag = 'input window, operand 0, single buffered']
    #allocation3 [shape = 's32[2]{0}', space=sflag, size = 0x8, scoped, tag = 'scoped memory for planar_flow.1']
    #allocation4 [shape = 's32[2]{0}', space=sflag, size = 0x8, scoped, tag = 'scoped memory for planar_flow.1']
    #allocation5 [shape = 'u8[8192]{0}', space=vmem, size = 0x2000, scoped, tag = 'output window, operand 0']
    #allocation6 [shape = 'u8[8192]{0}', space=vmem, size = 0x2000, scoped, tag = 'output window, operand 1']
    #allocation7 [shape = 's32[2]{0}', space=sflag, size = 0x8, scoped, tag = 'scoped memory for planar_flow.1']
    %10 = vsyncpa [#allocation4], 0
    %11 = vsyncpa [#allocation3], 0
    %s12 = scalar_lea.sflag [#allocation3], 1
    %13 = vsyncpa %s12, 0
    %14 = vsyncpa [#allocation7], 0
    %s15 = scalar_lea.sflag [#allocation7], 1
    %16 = vsyncpa %s15, 0
    loop: start=0, step=1, limit=4
    $region2: #{planar_flow.1} parent=1 // loop_pre_header
      _
    $region3: #{planar_flow.1} parent=1 // loop_header
      %s18 = sphi 0, %s22
      %p19 = scmp.ge.s32.totalorder %s18, 4
      %s26 = sphi 0, %s26
      %s28 = sphi 0, %s26
      %s29 = sphi 0, %s28
      %s43 = sphi 0, %s29
      %s49 = sphi 0, %s51
      %s52 = sphi 0, %s49
      %s53 = sphi 0, %s52
      %s69 = sphi 0, %s53
      %s75 = sphi 0, %s77
      %s78 = sphi 0, %s75
      %s79 = sphi 0, %s78
      %s95 = sphi 0, %s79
      %s101 = sphi 0, %s103
      %s104 = sphi 0, %s101
      %s105 = sphi 0, %s104
      %s121 = sphi 0, %s105
      %s127 = sphi 0, %s129
      %s130 = sphi 0, %s127
      %s131 = sphi 0, %s130
      %s147 = sphi 0, %s131
    $region4: #{planar_flow.1} parent=1 // loop_header_branch
      %21 = sbr.rel (%p19) target = $region8
    $region5: #{planar_flow.1} parent=1 // loop_body
      %s23 = ssub.s32 %s18, 1
      %s24 = ssub.s32 %s18, 2
      %s25 = sadd.s32 %s18, 1
      %s27 = sadd.s32 %s26, 1
      %p30 = scmp.eq.s32.totalorder %s18, 1
      %p31 = scmp.ne.s32.totalorder %s26, %s28
      %p32 = scmp.eq.s32.totalorder %s18, 0
      %p33 = por %p31, %p32
      %p34 = scmp.ne.s32.totalorder %s26, %s28
      %p35 = scmp.eq.s32.totalorder %s23, 1
      %p36 = por %p34, %p35
      %p37 = scmp.ne.s32.totalorder %s28, %s29
      %p38 = scmp.eq.s32.totalorder %s23, 0
      %p39 = por %p37, %p38
      %p40 = scmp.ne.s32.totalorder %s28, %s29
      %p41 = scmp.eq.s32.totalorder %s24, 1
      %p42 = por %p40, %p41
      %p44 = scmp.ne.s32.totalorder %s29, %s43
      %p45 = scmp.eq.s32.totalorder %s24, 0
      %p46 = por %p44, %p45
      %s47 = ssub.s32 %s18, %s25
      %p48 = scmp.eq.s32.totalorder %s47, 0
      %s50 = sadd.s32 %s49, 1
      %s51 = scalar_select %p48, %s49, %s50
      %p54 = pneg %p48
      %p55 = scmp.eq.s32.totalorder %s18, 1
      %p56 = por %p54, %p55
      %p57 = scmp.ne.s32.totalorder %s49, %s52
      %p58 = scmp.eq.s32.totalorder %s18, 0
      %p59 = por %p57, %p58
      %p60 = scmp.ne.s32.totalorder %s49, %s52
      %p61 = scmp.eq.s32.totalorder %s23, 1
      %p62 = por %p60, %p61
      %p63 = scmp.ne.s32.totalorder %s52, %s53
      %p64 = scmp.eq.s32.totalorder %s23, 0
      %p65 = por %p63, %p64
      %p66 = scmp.ne.s32.totalorder %s52, %s53
      %p67 = scmp.eq.s32.totalorder %s24, 1
      %p68 = por %p66, %p67
      %p70 = scmp.ne.s32.totalorder %s53, %s69
      %p71 = scmp.eq.s32.totalorder %s24, 0
      %p72 = por %p70, %p71
      %s73 = ssub.s32 %s18, %s25
      %p74 = scmp.eq.s32.totalorder %s73, 0
      %s76 = sadd.s32 %s75, 1
      %s77 = scalar_select %p74, %s75, %s76
      %p80 = pneg %p74
      %p81 = scmp.eq.s32.totalorder %s18, 1
      %p82 = por %p80, %p81
      %p83 = scmp.ne.s32.totalorder %s75, %s78
      %p84 = scmp.eq.s32.totalorder %s18, 0
      %p85 = por %p83, %p84
      %p86 = scmp.ne.s32.totalorder %s75, %s78
      %p87 = scmp.eq.s32.totalorder %s23, 1
      %p88 = por %p86, %p87
      %p89 = scmp.ne.s32.totalorder %s78, %s79
      %p90 = scmp.eq.s32.totalorder %s23, 0
      %p91 = por %p89, %p90
      %p92 = scmp.ne.s32.totalorder %s78, %s79
      %p93 = scmp.eq.s32.totalorder %s24, 1
      %p94 = por %p92, %p93
      %p96 = scmp.ne.s32.totalorder %s79, %s95
      %p97 = scmp.eq.s32.totalorder %s24, 0
      %p98 = por %p96, %p97
      %s99 = ssub.s32 %s18, %s25
      %p100 = scmp.eq.s32.totalorder %s99, 0
      %s102 = sadd.s32 %s101, 1
      %s103 = scalar_select %p100, %s101, %s102
      %p106 = pneg %p100
      %p107 = scmp.eq.s32.totalorder %s18, 1
      %p108 = por %p106, %p107
      %p109 = scmp.ne.s32.totalorder %s101, %s104
      %p110 = scmp.eq.s32.totalorder %s18, 0
      %p111 = por %p109, %p110
      %p112 = scmp.ne.s32.totalorder %s101, %s104
      %p113 = scmp.eq.s32.totalorder %s23, 1
      %p114 = por %p112, %p113
      %p115 = scmp.ne.s32.totalorder %s104, %s105
      %p116 = scmp.eq.s32.totalorder %s23, 0
      %p117 = por %p115, %p116
      %p118 = scmp.ne.s32.totalorder %s104, %s105
      %p119 = scmp.eq.s32.totalorder %s24, 1
      %p120 = por %p118, %p119
      %p122 = scmp.ne.s32.totalorder %s105, %s121
      %p123 = scmp.eq.s32.totalorder %s24, 0
      %p124 = por %p122, %p123
      %s125 = ssub.s32 %s18, %s25
      %p126 = scmp.eq.s32.totalorder %s125, 0
      %s128 = sadd.s32 %s127, 1
      %s129 = scalar_select %p126, %s127, %s128
      %p132 = pneg %p126
      %p133 = scmp.eq.s32.totalorder %s18, 1
      %p134 = por %p132, %p133
      %p135 = scmp.ne.s32.totalorder %s127, %s130
      %p136 = scmp.eq.s32.totalorder %s18, 0
      %p137 = por %p135, %p136
      %p138 = scmp.ne.s32.totalorder %s127, %s130
      %p139 = scmp.eq.s32.totalorder %s23, 1
      %p140 = por %p138, %p139
      %p141 = scmp.ne.s32.totalorder %s130, %s131
      %p142 = scmp.eq.s32.totalorder %s23, 0
      %p143 = por %p141, %p142
      %p144 = scmp.ne.s32.totalorder %s130, %s131
      %p145 = scmp.eq.s32.totalorder %s24, 1
      %p146 = por %p144, %p145
      %p148 = scmp.ne.s32.totalorder %s131, %s147
      %p149 = scmp.eq.s32.totalorder %s24, 0
      %p150 = por %p148, %p149
      %p151 = scmp.le.s32.totalorder 1, %s18
      %p152 = scmp.lt.s32.totalorder %s18, 3
      %p153 = pnand %p151, %p152
      %p154 = pneg %p153
      // Predicated region
      $region9: #{planar_flow.1} parent=5 // pred_check
        _
      $region10: #{planar_flow.1} parent=5 // pred_check_branch
        %156 = sbr.rel (%p153) target = $region12
      $region11: #{planar_flow.1} parent=5 // pred_region
        %s157 = ssub.s32 %s18, 1
        // Predicated region
        $region13: #{planar_flow.1} parent=11 // pred_check
          %p158 = pneg %p39
        $region14: #{planar_flow.1} parent=11 // pred_check_branch
          %160 = sbr.rel (%p158) target = $region16
        $region15: #{planar_flow.1} parent=11 // pred_region
          %162 = vsyncadd [#allocation4], 0
          %s164 = sshll.u32 %s0, 4
          %s165 = int_to_ptr.vmem [resolvable:$true] %s164
          %167 = dma.vmem_to_smem %s165, 64, [#allocation2], [#allocation4]
        $region16: #{planar_flow.1} parent=11 // pred_fallthru
          _
      $region12: #{planar_flow.1} parent=5 // pred_fallthru
        _
      %p168 = scmp.lt.s32.totalorder %s18, 2
      // Predicated region
      $region17: #{planar_flow.1} parent=5 // pred_check
        %p169 = pneg %p168
      $region18: #{planar_flow.1} parent=5 // pred_check_branch
        %171 = sbr.rel (%p169) target = $region20
      $region19: #{planar_flow.1} parent=5 // pred_region
        // Predicated region
        $region21: #{planar_flow.1} parent=19 // pred_check
          %p172 = pneg %p59
        $region22: #{planar_flow.1} parent=19 // pred_check_branch
          %174 = sbr.rel (%p172) target = $region24
        $region23: #{planar_flow.1} parent=19 // pred_region
          %p175 = scmp.lt.s32.totalorder %s18, 1
          %s176 = scalar_select %p175, %s18, 1
          %s177 = smul.addr %s176, 8
          %s178 = scalar_lea.vmem %s1, %s177
        $region24: #{planar_flow.1} parent=19 // pred_fallthru
          _
        // Predicated region
        $region25: #{planar_flow.1} parent=19 // pred_check
          %p179 = pneg %p85
        $region26: #{planar_flow.1} parent=19 // pred_check_branch
          %181 = sbr.rel (%p179) target = $region28
        $region27: #{planar_flow.1} parent=19 // pred_region
          %p182 = scmp.lt.s32.totalorder %s18, 1
          %s183 = scalar_select %p182, %s18, 1
          %s184 = smul.addr %s183, 8
          %s185 = scalar_lea.vmem %s2, %s184
        $region28: #{planar_flow.1} parent=19 // pred_fallthru
          _
      $region20: #{planar_flow.1} parent=5 // pred_fallthru
        _
      %p186 = scmp.le.s32.totalorder 1, %s18
      %p187 = scmp.lt.s32.totalorder %s18, 3
      %p188 = pnand %p186, %p187
      %p189 = pneg %p188
      // Predicated region
      $region29: #{planar_flow.1} parent=5 // pred_check
        _
      $region30: #{planar_flow.1} parent=5 // pred_check_branch
        %191 = sbr.rel (%p188) target = $region32
      $region31: #{planar_flow.1} parent=5 // pred_region
        %s192 = ssub.s32 %s18, 1
        // Predicated region
        $region33: #{planar_flow.1} parent=31 // pred_check
          %p193 = pneg %p39
        $region34: #{planar_flow.1} parent=31 // pred_check_branch
          %195 = sbr.rel (%p193) target = $region36
        $region35: #{planar_flow.1} parent=31 // pred_region
          %197 = dma.done [#allocation4], 64
        $region36: #{planar_flow.1} parent=31 // pred_fallthru
          _
        %198 = sfence
        %p199 = pneg %p39
        %p200 = pneg %p36
        %p201 = scmp.lt.s32.totalorder %s23, 1
        %s202 = scalar_select %p201, %s23, 1
        %s203 = smul.addr %s202, 8
        %s204 = scalar_lea.vmem %s1, %s203
        %p205 = pneg %p65
        %p206 = pneg %p62
        %p207 = scmp.lt.s32.totalorder %s23, 1
        %s208 = scalar_select %p207, %s23, 1
        %s209 = smul.addr %s208, 8
        %s210 = scalar_lea.vmem %s2, %s209
        %p211 = pneg %p91
        %p212 = pneg %p88
        %p213 = pneg %p117
        %p214 = pneg %p114
        %s215 = sand.u32 %s104, 1
        %s216 = scalar_lea.sflag [#allocation3], %s215
        %s217 = sand.u32 %s104, 1
        %s218 = smul.addr %s217, 8
        %s219 = scalar_lea.vmem [#allocation5], %s218
        %p220 = pneg %p143
        %p221 = pneg %p140
        %s222 = sand.u32 %s130, 1
        %s223 = scalar_lea.sflag [#allocation7], %s222
        %s224 = sand.u32 %s130, 1
        %s225 = smul.addr %s224, 8
        %s226 = scalar_lea.vmem [#allocation6], %s225
        %p227 = scmp.lt.s32.totalorder %s23, 1
        %s228 = scalar_select %p227, %s23, 1
        %s229 = smul.addr %s228, 8
        %s230 = scalar_lea.vmem %s1, %s229
        %p231 = scmp.lt.s32.totalorder %s23, 1
        %s232 = scalar_select %p231, %s23, 1
        %s233 = smul.addr %s232, 8
        %s234 = scalar_lea.vmem %s2, %s233
        %v235 = vld [vmem:[%s230] sm:$0xff]
        %v236 = vld [vmem:[%s234] sm:$0xff]
        %s237 = sld [smem:[#allocation2]]
        %s238 = sld [smem:[#allocation2 + $0x1]]
        %s239 = sld [smem:[#allocation2 + $0x2]]
        %s240 = sld [smem:[#allocation2 + $0x3]]
        %s241 = sld [smem:[#allocation2 + $0x4]]
        %s242 = sld [smem:[#allocation2 + $0x5]]
        %v243 = vstv %s237
        %v244 = vmul.f32 %v243, %v235
        %v245 = vstv %s238
        %v246 = vadd.f32 %v244, %v245
        %vm247 = vcmp.lt.f32.partialorder %v246, 0.0
        %v248 = vstv %s240
        %v249 = vstv %s239
        %v250 = vsel %vm247, %v248, %v249
        %v251 = vmul.f32 %v250, %v246
        %v252 = vadd.f32 %v235, %v251
        %v253 = vstv %s241
        %v254 = vstv %s242
        %v255 = vsel %vm247, %v253, %v254
        %v256 = vadd.f32 %v236, %v255
        %s257 = sld [smem:[#allocation2 + $0x80]]
        %s258 = sld [smem:[#allocation2 + $0x81]]
        %s259 = sld [smem:[#allocation2 + $0x82]]
        %s260 = sld [smem:[#allocation2 + $0x83]]
        %s261 = sld [smem:[#allocation2 + $0x84]]
        %s262 = sld [smem:[#allocation2 + $0x85]]
        %v263 = vstv %s257
        %v264 = vmul.f32 %v263, %v252
        %v265 = vstv %s258
        %v266 = vadd.f32 %v264, %v265
        %vm267 = vcmp.lt.f32.partialorder %v266, 0.0
        %v268 = vstv %s260
        %v269 = vstv %s259
        %v270 = vsel %vm267, %v268, %v269
        %v271 = vmul.f32 %v270, %v266
        %v272 = vadd.f32 %v252, %v271
        %v273 = vstv %s261
        %v274 = vstv %s262
        %v275 = vsel %vm267, %v273, %v274
        %v276 = vadd.f32 %v256, %v275
        %s277 = sld [smem:[#allocation2 + $0x100]]
        %s278 = sld [smem:[#allocation2 + $0x101]]
        %s279 = sld [smem:[#allocation2 + $0x102]]
        %s280 = sld [smem:[#allocation2 + $0x103]]
        %s281 = sld [smem:[#allocation2 + $0x104]]
        %s282 = sld [smem:[#allocation2 + $0x105]]
        %v283 = vstv %s277
        %v284 = vmul.f32 %v283, %v272
        %v285 = vstv %s278
        %v286 = vadd.f32 %v284, %v285
        %vm287 = vcmp.lt.f32.partialorder %v286, 0.0
        %v288 = vstv %s280
        %v289 = vstv %s279
        %v290 = vsel %vm287, %v288, %v289
        %v291 = vmul.f32 %v290, %v286
        %v292 = vadd.f32 %v272, %v291
        %v293 = vstv %s281
        %v294 = vstv %s282
        %v295 = vsel %vm287, %v293, %v294
        %v296 = vadd.f32 %v276, %v295
        %s297 = sld [smem:[#allocation2 + $0x180]]
        %s298 = sld [smem:[#allocation2 + $0x181]]
        %s299 = sld [smem:[#allocation2 + $0x182]]
        %s300 = sld [smem:[#allocation2 + $0x183]]
        %s301 = sld [smem:[#allocation2 + $0x184]]
        %s302 = sld [smem:[#allocation2 + $0x185]]
        %v303 = vstv %s297
        %v304 = vmul.f32 %v303, %v292
        %v305 = vstv %s298
        %v306 = vadd.f32 %v304, %v305
        %vm307 = vcmp.lt.f32.partialorder %v306, 0.0
        %v308 = vstv %s300
        %v309 = vstv %s299
        %v310 = vsel %vm307, %v308, %v309
        %v311 = vmul.f32 %v310, %v306
        %v312 = vadd.f32 %v292, %v311
        %v313 = vstv %s301
        %v314 = vstv %s302
        %v315 = vsel %vm307, %v313, %v314
        %v316 = vadd.f32 %v296, %v315
        %317 = vst [vmem:[%s219] sm:$0xff] %v312
        %318 = vst [vmem:[%s226] sm:$0xff] %v316
        %s319 = sand.u32 %s104, 1
        %s320 = scalar_lea.sflag [#allocation3], %s319
        %s321 = sand.u32 %s104, 1
        %s322 = smul.addr %s321, 8
        %s323 = scalar_lea.vmem [#allocation5], %s322
        %s324 = sand.u32 %s130, 1
        %s325 = scalar_lea.sflag [#allocation7], %s324
        %s326 = sand.u32 %s130, 1
        %s327 = smul.addr %s326, 8
        %s328 = scalar_lea.vmem [#allocation6], %s327
        // Predicated region
        $region37: #{planar_flow.1} parent=31 // pred_check
          %p329 = pneg %p114
        $region38: #{planar_flow.1} parent=31 // pred_check_branch
          %331 = sbr.rel (%p329) target = $region40
        $region39: #{planar_flow.1} parent=31 // pred_region
          %333 = vsyncadd %s320, 0
          %s334 = smul.addr %s23, 8
          %s335 = scalar_lea.hbm %s3, %s334
          %s337 = sshll.u32 %s323, 4
          %s338 = int_to_ptr.vmem [resolvable:$true] %s337
          %s339 = sshll.u32 %s335, 4
          %s340 = int_to_ptr.hbm [resolvable:$true] %s339
          %342 = dma.vmem_to_hbm [thread:$0]  %s338, 128, %s340, %s320
        $region40: #{planar_flow.1} parent=31 // pred_fallthru
          _
        // Predicated region
        $region41: #{planar_flow.1} parent=31 // pred_check
          %p343 = pneg %p140
        $region42: #{planar_flow.1} parent=31 // pred_check_branch
          %345 = sbr.rel (%p343) target = $region44
        $region43: #{planar_flow.1} parent=31 // pred_region
          %347 = vsyncadd %s325, 0
          %s348 = smul.addr %s23, 8
          %s349 = scalar_lea.hbm %s4, %s348
          %s351 = sshll.u32 %s328, 4
          %s352 = int_to_ptr.vmem [resolvable:$true] %s351
          %s353 = sshll.u32 %s349, 4
          %s354 = int_to_ptr.hbm [resolvable:$true] %s353
          %356 = dma.vmem_to_hbm [thread:$0]  %s352, 128, %s354, %s325
        $region44: #{planar_flow.1} parent=31 // pred_fallthru
          _
      $region32: #{planar_flow.1} parent=5 // pred_fallthru
        _
      %p357 = scmp.le.s32.totalorder 2, %s18
      // Predicated region
      $region45: #{planar_flow.1} parent=5 // pred_check
        %p358 = pneg %p357
      $region46: #{planar_flow.1} parent=5 // pred_check_branch
        %360 = sbr.rel (%p358) target = $region48
      $region47: #{planar_flow.1} parent=5 // pred_region
        %s361 = ssub.s32 %s18, 2
        // Predicated region
        $region49: #{planar_flow.1} parent=47 // pred_check
          %p362 = pneg %p120
        $region50: #{planar_flow.1} parent=47 // pred_check_branch
          %364 = sbr.rel (%p362) target = $region52
        $region51: #{planar_flow.1} parent=47 // pred_region
          %s365 = sand.u32 %s105, 1
          %s366 = scalar_lea.sflag [#allocation3], %s365
          %s367 = sand.u32 %s105, 1
          %s368 = smul.addr %s367, 8
          %s369 = scalar_lea.vmem [#allocation5], %s368
          %371 = dma.done %s366, 128
        $region52: #{planar_flow.1} parent=47 // pred_fallthru
          _
        // Predicated region
        $region53: #{planar_flow.1} parent=47 // pred_check
          %p372 = pneg %p146
        $region54: #{planar_flow.1} parent=47 // pred_check_branch
          %374 = sbr.rel (%p372) target = $region56
        $region55: #{planar_flow.1} parent=47 // pred_region
          %s375 = sand.u32 %s131, 1
          %s376 = scalar_lea.sflag [#allocation7], %s375
          %s377 = sand.u32 %s131, 1
          %s378 = smul.addr %s377, 8
          %s379 = scalar_lea.vmem [#allocation6], %s378
          %381 = dma.done %s376, 128
        $region56: #{planar_flow.1} parent=47 // pred_fallthru
          _
      $region48: #{planar_flow.1} parent=5 // pred_fallthru
        _
    $region6: #{planar_flow.1} parent=1 // loop_footer
      %s22 = sadd.s32 1, %s18
    $region7: #{planar_flow.1} parent=1 // loop_footer_branch
      %17 = sbr.rel target = $region3
    $region8: #{planar_flow.1} parent=1 // loop_exit
      _
    %382 = vsyncpa [#allocation3], 1
    %s383 = scalar_lea.sflag [#allocation3], 1
    %384 = vsyncpa %s383, 1
    %385 = vsyncpa [#allocation7], 1
    %s386 = scalar_lea.sflag [#allocation7], 1
    %387 = vsyncpa %s386, 1
    %388 = vsyncpa [#allocation4], 1
    %s389 = scalar_lea.sflag [#allocation4], 1
    %390 = vsyncpa %s389, 1

</llo_original>
